<compile_context>
chip_gen: v7x
topology: tpu7x:2x2x1
jax: 0.10.0
libtpu: 0.0.40
codegen_flags: <defaults>
</compile_context>

<pallas_src>
from functools import partial

import jax
import jax.numpy as jnp
from jax.experimental import pallas as pl
from jax.experimental.pallas import tpu as pltpu


def _focal_loss_kernel(logits_ref, targets_ref, out_ref, acc_ref, *,
                       alpha, gamma, n_cols, block_cols):
    # logits_ref : (C, TN) native dtype in VMEM  -- batch on lanes, classes on sublanes
    # targets_ref: (1, TN) int32 in VMEM          -- lane-dense target indices
    # out_ref    : (1, 1)  f32 VMEM output (resident across the whole grid)
    # acc_ref    : (1, 1)  f32 VMEM scratch -- running sum of per-sample CE
    pid = pl.program_id(0)

    @pl.when(pid == 0)
    def _init():
        acc_ref[...] = jnp.zeros_like(acc_ref)

    logits = logits_ref[...].astype(jnp.float32)            # cast in-register (VPU), not in HBM
    tgt = targets_ref[...]                                   # (1, TN) int32

    # --- per-sample cross entropy: logsumexp(logits) - logits[target], per lane/column ---
    m = jnp.max(logits, axis=0, keepdims=True)               # (1, TN)  sublane reduce (XLU)
    lse = m + jnp.log(jnp.sum(jnp.exp(logits - m), axis=0, keepdims=True))   # (1, TN)

    cls = jax.lax.broadcasted_iota(jnp.int32, logits.shape, 0)               # (C, TN) class idx
    tgt_logit = jnp.sum(jnp.where(cls == tgt, logits, 0.0),
                        axis=0, keepdims=True)                               # (1, TN) select-reduce

    per_sample = lse - tgt_logit                                             # (1, TN)

    # Mask lanes past the true batch size (the last block of the grid may be padded).
    col = jax.lax.broadcasted_iota(jnp.int32, per_sample.shape, 1) + pid * block_cols
    per_sample = jnp.where(col < n_cols, per_sample, 0.0)

    # Accumulate the CE sum across grid steps (kept as a (1,1) vector -- no scalar round-trip).
    acc_ref[...] += jnp.sum(per_sample, axis=1, keepdims=True)

    @pl.when(pid == pl.num_programs(0) - 1)
    def _finalize():
        bce = acc_ref[...] * jnp.float32(1.0 / n_cols)        # (1,1) mean CE
        pt = jnp.exp(-bce)
        one_m_pt = jnp.maximum(1.0 - pt, 0.0)                 # clamp: NaN-proof for bce ~ 0
        if gamma == 2.0:
            focal_w = one_m_pt * one_m_pt                     # exact VPU mults, no exp/log pow
        elif float(gamma).is_integer() and gamma >= 0:
            focal_w = one_m_pt ** int(gamma)                  # integer pow -> repeated mults
        else:
            focal_w = one_m_pt ** gamma
        # self.reduce=True applies torch.mean to a scalar -> identical scalar.
        out_ref[...] = (alpha * focal_w * bce).astype(out_ref.dtype)


def _choose_block_cols(n, c, logits_itemsize, block_budget_bytes=4 << 20):
    """Largest lane tile along the batch axis, using the *padded* VMEM footprint.

    Sublane dims pad to multiples of 8, so one column of the (C, TN) logits block costs
    ceil(C/8)*8*itemsize bytes and one column of the (1, TN) int32 targets block costs 32 bytes.
    4 MiB per buffer (<= ~8 MiB double-buffered per input) stays well inside v7x's 32 MiB scoped
    VMEM default; v5e/v6e have 2x the headroom.  For C=5 this is >100k samples -> virtually any
    batch runs as a single grid step (no per-step overhead, one big DMA).
    """
    pad8 = lambda d: ((d + 7) // 8) * 8
    bytes_per_col = pad8(c) * logits_itemsize + pad8(1) * 4
    max_cols = max(128, block_budget_bytes // bytes_per_col)
    if n <= max_cols:
        return n                               # single block; block == full dim is always legal
    return max(128, (max_cols // 128) * 128)   # lane tile must be a multiple of 128


def focal_loss(logits, targets, alpha=1.0, gamma=2.0, reduce=True, block_cols=None):
    """logits: (N, C) float (f32 or bf16), targets: (N,) int class indices. Returns scalar f32."""
    n, c = logits.shape

    # Lane-dense presentation: batch on lanes, classes on sublanes.  The (N, C) -> (C, N)
    # transpose of a tiny head output is negligible wrapper-side layout plumbing.
    logits_t = jnp.transpose(logits, (1, 0))                 # (C, N), native dtype
    targets_2d = targets.astype(jnp.int32).reshape(1, n)     # (1, N), lane-dense

    itemsize = jnp.dtype(logits.dtype).itemsize
    tn = _choose_block_cols(n, c, itemsize) if block_cols is None else int(block_cols)
    tn = min(tn, n)
    assert tn == n or tn % 128 == 0, "lane tile must be a multiple of 128 or the full batch"
    grid = (pl.cdiv(n, tn),)

    cost = pl.CostEstimate(
        flops=6 * n * c,
        transcendentals=n * c + 2,
        bytes_accessed=n * c * itemsize + n * 4 + 4,
    )

    # TODO(synk): for token-level / very large N on v7x, a leading size-2 "parallel" grid axis
    # (one partial CE sum per TensorCore, combined in a tiny finalize) would halve wall-clock;
    # at the training shape (N=8) a single sequential step is optimal.
    out = pl.pallas_call(
        partial(_focal_loss_kernel, alpha=float(alpha), gamma=float(gamma),
                n_cols=n, block_cols=tn),
        out_shape=jax.ShapeDtypeStruct((1, 1), jnp.float32),
        grid_spec=pltpu.PrefetchScalarGridSpec(
            num_scalar_prefetch=0,
            grid=grid,
            in_specs=[
                pl.BlockSpec((c, tn), lambda i: (0, i)),   # logits: classes x batch-lane tile
                pl.BlockSpec((1, tn), lambda i: (0, i)),   # targets: lane-dense int32
            ],
            out_specs=pl.BlockSpec((1, 1), lambda i: (0, 0)),
            scratch_shapes=[pltpu.VMEM((1, 1), jnp.float32)],
        ),
        compiler_params=pltpu.CompilerParams(
            dimension_semantics=("arbitrary",),            # reduction over lane tiles
            vmem_limit_bytes=32 * 1024 * 1024,
        ),
        cost_estimate=cost,
    )(logits_t, targets_2d)                                # NOTE: no wrapper-side upcast

    # reduce=True vs False is the same scalar here (CE already reduced to a scalar mean).
    return out[0, 0]


def _reference_focal_loss(logits, targets, alpha=1.0, gamma=2.0):
    logp = jax.nn.log_softmax(logits.astype(jnp.float32), axis=-1)
    per = -jnp.take_along_axis(logp, targets[:, None].astype(jnp.int32), axis=-1)[:, 0]
    bce = jnp.mean(per)
    pt = jnp.exp(-bce)
    return alpha * (1.0 - pt) ** gamma * bce


if __name__ == "__main__":
    key = jax.random.PRNGKey(0)
    k1, k2, k3 = jax.random.split(key, 3)

    # CFG.batch_size = 8, CFG.target_size = 5 (DeiT head outputs 5 cassava classes).
    N, C = 8, 5
    logits = jax.random.normal(k1, (N, C), dtype=jnp.float32)
    targets = jax.random.randint(k2, (N,), 0, C, dtype=jnp.int32)

    loss = jax.block_until_ready(focal_loss(logits, targets, alpha=1.0, gamma=2.0, reduce=True))
    ref = _reference_focal_loss(logits, targets)
    assert jnp.allclose(loss, ref, atol=1e-5, rtol=1e-5), (loss, ref)

    # Multi-block path: grid over N (lane tiles of 128) with a padded (masked) final tile.
    N2 = 300
    logits2 = jax.random.normal(k3, (N2, C), dtype=jnp.float32)
    targets2 = jax.random.randint(k2, (N2,), 0, C, dtype=jnp.int32)
    loss2 = jax.block_until_ready(focal_loss(logits2, targets2, block_cols=128))
    ref2 = _reference_focal_loss(logits2, targets2)
    assert jnp.allclose(loss2, ref2, atol=1e-5, rtol=1e-5), (loss2, ref2)

    # Native-bf16 logits path (no wrapper upcast; kernel casts in-register).
    logits_bf16 = logits.astype(jnp.bfloat16)
    loss3 = jax.block_until_ready(focal_loss(logits_bf16, targets))
    ref3 = _reference_focal_loss(logits_bf16, targets)
    assert jnp.allclose(loss3, ref3, atol=1e-4, rtol=1e-4), (loss3, ref3)

    print("KERNEL_OK")
</pallas_src>

<mosaic_0001>
module attributes {stable_mosaic.version = 11 : i64} {
  func.func @_focal_loss_kernel(%arg0: i32, %arg1: memref<5x8xf32, #tpu.memory_space<vmem>>, %arg2: memref<1x8xi32, #tpu.memory_space<vmem>>, %arg3: memref<1x1xf32, #tpu.memory_space<vmem>>, %arg4: memref<1x1xf32, #tpu.memory_space<vmem>>) attributes {dimension_semantics = [#tpu.dimension_semantics<arbitrary>], iteration_bounds = array<i64: 1>, scalar_prefetch = 0 : i64, scratch_operands = 1 : i64, tpu.core_type = #tpu.core_type<tc>, window_params = [{transform_indices = @transform_0, window_bounds = array<i64: 5, 8>}, {transform_indices = @transform_1, window_bounds = array<i64: 1, 8>}, {pipeline_mode = #tpu.pipeline_mode<synchronous>, transform_indices = @transform_2, window_bounds = array<i64: 1, 1>}]} {
    %c0_i32 = arith.constant 0 : i32
    %0 = arith.cmpi eq, %arg0, %c0_i32 : i32
    %1 = arith.extui %0 : i1 to i32
    %c0_i32_0 = arith.constant 0 : i32
    %2 = arith.cmpi ne, %1, %c0_i32_0 : i32
    scf.if %2 {
      %cst_16 = arith.constant 0.000000e+00 : f32
      %38 = vector.broadcast %cst_16 : f32 to vector<1x1xf32>
      %c0_17 = arith.constant 0 : index
      %c0_18 = arith.constant 0 : index
      %39 = vector.load %arg4[%c0_17, %c0_18] : memref<1x1xf32, #tpu.memory_space<vmem>>, vector<1x1xf32>
      tpu.vector_store %arg4[%c0_17, %c0_18], %38 {strides = array<i32>} : memref<1x1xf32, #tpu.memory_space<vmem>>, vector<1x1xf32>,
    } else {
    }
    %c0 = arith.constant 0 : index
    %c0_1 = arith.constant 0 : index
    %3 = vector.load %arg1[%c0, %c0_1] : memref<5x8xf32, #tpu.memory_space<vmem>>, vector<5x8xf32>
    %c0_2 = arith.constant 0 : index
    %c0_3 = arith.constant 0 : index
    %4 = vector.load %arg2[%c0_2, %c0_3] : memref<1x8xi32, #tpu.memory_space<vmem>>, vector<1x8xi32>
    %cst = arith.constant dense<0xFF800000> : vector<8xf32>
    %5 = vector.multi_reduction <maximumf>, %3, %cst [0] : vector<5x8xf32> to vector<8xf32>
    %6 = vector.shape_cast %5 : vector<8xf32> to vector<1x8xf32>
    %7 = vector.broadcast %6 : vector<1x8xf32> to vector<5x8xf32>
    %8 = arith.subf %3, %7 : vector<5x8xf32>
    %9 = math.exp %8 : vector<5x8xf32>
    %cst_4 = arith.constant dense<0.000000e+00> : vector<8xf32>
    %10 = vector.multi_reduction <add>, %9, %cst_4 [0] : vector<5x8xf32> to vector<8xf32>
    %11 = vector.shape_cast %10 : vector<8xf32> to vector<1x8xf32>
    %12 = math.log %11 : vector<1x8xf32>
    %13 = arith.addf %6, %12 : vector<1x8xf32>
    %14 = tpu.iota {dimensions = array<i32: 0>} : vector<5x8xi32>
    %15 = vector.broadcast %4 : vector<1x8xi32> to vector<5x8xi32>
    %16 = arith.cmpi eq, %14, %15 : vector<5x8xi32>
    %cst_5 = arith.constant 0.000000e+00 : f32
    %17 = vector.broadcast %cst_5 : f32 to vector<5x8xf32>
    %18 = arith.select %16, %3, %17 : vector<5x8xi1>, vector<5x8xf32>
    %cst_6 = arith.constant dense<0.000000e+00> : vector<8xf32>
    %19 = vector.multi_reduction <add>, %18, %cst_6 [0] : vector<5x8xf32> to vector<8xf32>
    %20 = vector.shape_cast %19 : vector<8xf32> to vector<1x8xf32>
    %21 = arith.subf %13, %20 : vector<1x8xf32>
    %22 = tpu.iota {dimensions = array<i32: 1>} : vector<1x8xi32>
    %c8_i32 = arith.constant 8 : i32
    %23 = arith.muli %arg0, %c8_i32 : i32
    %24 = vector.broadcast %23 : i32 to vector<1x8xi32>
    %25 = arith.addi %22, %24 : vector<1x8xi32>
    %c8_i32_7 = arith.constant 8 : i32
    %26 = vector.broadcast %c8_i32_7 : i32 to vector<1x8xi32>
    %27 = arith.cmpi slt, %25, %26 : vector<1x8xi32>
    %cst_8 = arith.constant 0.000000e+00 : f32
    %28 = vector.broadcast %cst_8 : f32 to vector<1x8xf32>
    %29 = arith.select %27, %21, %28 : vector<1x8xi1>, vector<1x8xf32>
    %c0_9 = arith.constant 0 : index
    %c0_10 = arith.constant 0 : index
    %30 = vector.load %arg4[%c0_9, %c0_10] : memref<1x1xf32, #tpu.memory_space<vmem>>, vector<1x1xf32>
    %cst_11 = arith.constant dense<0.000000e+00> : vector<1xf32>
    %31 = vector.multi_reduction <add>, %29, %cst_11 [1] : vector<1x8xf32> to vector<1xf32>
    %32 = vector.shape_cast %31 : vector<1xf32> to vector<1x1xf32>
    %33 = arith.addf %30, %32 : vector<1x1xf32>
    %c0_12 = arith.constant 0 : index
    %c0_13 = arith.constant 0 : index
    %34 = vector.load %arg4[%c0_12, %c0_13] : memref<1x1xf32, #tpu.memory_space<vmem>>, vector<1x1xf32>
    tpu.vector_store %arg4[%c0_12, %c0_13], %33 {strides = array<i32>} : memref<1x1xf32, #tpu.memory_space<vmem>>, vector<1x1xf32>,
    %c0_i32_14 = arith.constant 0 : i32
    %35 = arith.cmpi eq, %arg0, %c0_i32_14 : i32
    %36 = arith.extui %35 : i1 to i32
    %c0_i32_15 = arith.constant 0 : i32
    %37 = arith.cmpi ne, %36, %c0_i32_15 : i32
    scf.if %37 {
      %c0_16 = arith.constant 0 : index
      %c0_17 = arith.constant 0 : index
      %38 = vector.load %arg4[%c0_16, %c0_17] : memref<1x1xf32, #tpu.memory_space<vmem>>, vector<1x1xf32>
      %cst_18 = arith.constant 1.250000e-01 : f32
      %39 = vector.broadcast %cst_18 : f32 to vector<1x1xf32>
      %40 = arith.mulf %38, %39 : vector<1x1xf32>
      %cst_19 = arith.constant 0.000000e+00 : f32
      %41 = vector.broadcast %cst_19 : f32 to vector<1x1xf32>
      %42 = arith.subf %41, %40 : vector<1x1xf32>
      %43 = math.exp %42 : vector<1x1xf32>
      %cst_20 = arith.constant 1.000000e+00 : f32
      %44 = vector.broadcast %cst_20 : f32 to vector<1x1xf32>
      %45 = arith.subf %44, %43 : vector<1x1xf32>
      %cst_21 = arith.constant 0.000000e+00 : f32
      %46 = vector.broadcast %cst_21 : f32 to vector<1x1xf32>
      %47 = arith.maximumf %45, %46 : vector<1x1xf32>
      %48 = arith.mulf %47, %47 : vector<1x1xf32>
      %cst_22 = arith.constant 1.000000e+00 : f32
      %49 = vector.broadcast %cst_22 : f32 to vector<1x1xf32>
      %50 = arith.mulf %49, %48 : vector<1x1xf32>
      %51 = arith.mulf %50, %40 : vector<1x1xf32>
      %c0_23 = arith.constant 0 : index
      %c0_24 = arith.constant 0 : index
      %52 = vector.load %arg3[%c0_23, %c0_24] : memref<1x1xf32, #tpu.memory_space<vmem>>, vector<1x1xf32>
      tpu.vector_store %arg3[%c0_23, %c0_24], %51 {strides = array<i32>} : memref<1x1xf32, #tpu.memory_space<vmem>>, vector<1x1xf32>,
    } else {
    }
    return
  }
  func.func @transform_0(%arg0: i32) -> (i32, i32) {
    %c0_i32 = arith.constant 0 : i32
    %c0_i32_0 = arith.constant 0 : i32
    return %c0_i32, %arg0 : i32, i32
  }
  func.func @transform_1(%arg0: i32) -> (i32, i32) {
    %c0_i32 = arith.constant 0 : i32
    %c0_i32_0 = arith.constant 0 : i32
    return %c0_i32, %arg0 : i32, i32
  }
  func.func @transform_2(%arg0: i32) -> (i32, i32) {
    %c0_i32 = arith.constant 0 : i32
    %c0_i32_0 = arith.constant 0 : i32
    %c0_i32_1 = arith.constant 0 : i32
    return %c0_i32, %c0_i32_0 : i32, i32
  }
}

</mosaic_0001>

<llo_original>
// kernel: tpu_custom_call.1
$region0: #{tpu_custom_call.1}
  #allocation0 [shape = 'u32[]', space=smem, size = 0x4, offset = 0x4, fixed_abs, tag = 'smem constant byte address 0x4 - core index']
  #allocation1 [shape = 'u32[144,128]{1,0:T(1,128)}', space=vmem, size = 0x12000, scoped, tag = 'internal scratch']
  #allocation2 [shape = 'f32[1,1]{1,0:T(1,128)}', space=vmem, size = 0x200, scoped, tag = 'scratch operand']
  %s0 = inlined_call_operand.hbm [shape: f32[5,8], index: 0, kind: input, shape index: {}]
  %s1 = inlined_call_operand.vmem [shape: s32[1,8], index: 1, kind: input, shape index: {}]
  %s2 = inlined_call_operand.hbm [shape: f32[1,1], index: 2, kind: output, shape index: {}]
  %s3 = sld [smem:[#allocation0]]
  $region30: #{tpu_custom_call.1} parent=0
    _
  %s5 = ssub.s32 1, %s3
  %s6 = scalar_select 0, %s5, %s3
  $region1: #{tpu_custom_call.1} parent=0
    #allocation3 [shape = 'u8[4096]{0}', space=vmem, size = 0x1000, scoped, tag = 'input window, operand 0, single buffered']
    #allocation4 [shape = 's32[1]{0}', space=sflag, size = 0x4, scoped, tag = 'scoped memory for tpu_custom_call.1']
    #allocation5 [shape = 's32[1]{0}', space=sflag, size = 0x4, scoped, tag = 'scoped memory for tpu_custom_call.1']
    #allocation6 [shape = 'u8[512]{0}', space=vmem, size = 0x400, scoped, tag = 'output window, operand 0, single buffered']
    %7 = vsyncpa [#allocation4], 0
    %8 = vsyncpa [#allocation5], 0
    // Predicated region
    $region2: #{tpu_custom_call.1} parent=1 // pred_check
      _
    $region3: #{tpu_custom_call.1} parent=1 // pred_check_branch
      %10 = sbr.rel (0) target = $region5
    $region4: #{tpu_custom_call.1} parent=1 // pred_region
      %s12 = ssub.s32 128, 128
      %13 = vsyncadd [#allocation4], %s12
      %s15 = sshll.u32 [#allocation3], 4
      %s16 = int_to_ptr.vmem [resolvable:$true] %s15
      %18 = dma.hbm_to_vmem [thread:$0]  %s0, 128, %s16, [#allocation4]
    $region5: #{tpu_custom_call.1} parent=1 // pred_fallthru
      _
    // Predicated region
    $region6: #{tpu_custom_call.1} parent=1 // pred_check
      _
    $region7: #{tpu_custom_call.1} parent=1 // pred_check_branch
      %20 = sbr.rel (0) target = $region9
    $region8: #{tpu_custom_call.1} parent=1 // pred_region
      _
    $region9: #{tpu_custom_call.1} parent=1 // pred_fallthru
      _
    // Predicated region
    $region10: #{tpu_custom_call.1} parent=1 // pred_check
      _
    $region11: #{tpu_custom_call.1} parent=1 // pred_check_branch
      %22 = sbr.rel (0) target = $region13
    $region12: #{tpu_custom_call.1} parent=1 // pred_region
      %23 = dma.done [#allocation4], 128
    $region13: #{tpu_custom_call.1} parent=1 // pred_fallthru
      _
    %p24 = scmp.eq.s32.totalorder 0, 0
    // Predicated region
    $region14: #{tpu_custom_call.1} parent=1 // pred_check
      %p25 = pneg %p24
    $region15: #{tpu_custom_call.1} parent=1 // pred_check_branch
      %27 = sbr.rel (%p25) target = $region17
    $region16: #{tpu_custom_call.1} parent=1 // pred_region
      %vm28 = vcmask 0
      %29 = vst.msk [vmem:[#allocation2] sm:$0x1] %vm28, 0.0
    $region17: #{tpu_custom_call.1} parent=1 // pred_fallthru
      _
    %v30 = vld [vmem:[#allocation3] sm:$0x1f]
    %v31 = vld [vmem:[%s1] sm:$0x1]
    %vm32 = vcmask 61440
    %v33 = vsel %vm32, %v30, -inf
    %v34 = vrot.slane %v33, 4
    %v35 = vmax.f32 %v33, %v34
    %v36 = vrot.slane %v35, 2
    %v37 = vmax.f32 %v35, %v36
    %v38 = vrot.slane %v37, 1
    %v39 = vmax.f32 %v37, %v38
    %v40 = vsub.f32 %v30, %v39
    %v41 = vmul.f32 %v40, 1.442695
    %v42 = vpow.pop %v41
    %v43 = vsel %vm32, %v42, 0.0
    %v44 = vrot.slane %v43, 4
    %v45 = vadd.f32 %v43, %v44
    %v46 = vrot.slane %v45, 2
    %v47 = vadd.f32 %v45, %v46
    %v48 = vrot.slane %v47, 1
    %v49 = vadd.f32 %v47, %v48
    %v50 = vlog2.pop %v49
    %v51 = vmul.f32 %v50, 0.6931472
    %v52 = vadd.f32 %v39, %v51
    %v53 = vlaneseq
    %v54 = vshrl.u32 %v53, 7
    %v55 = vlaneseq
    %v56 = vshrl.u32 %v55, 7
    %v57 = vsub.s32 0, %v56
    %v58 = vrot.slane %v31, %v57
    %vm59 = vcmp.eq.s32.totalorder %v54, %v58
    %v60 = vsel %vm59, %v30, 0.0
    %v61 = vsel %vm32, %v60, 0.0
    %v62 = vrot.slane %v61, 4
    %v63 = vadd.f32 %v61, %v62
    %v64 = vrot.slane %v63, 2
    %v65 = vadd.f32 %v63, %v64
    %v66 = vrot.slane %v65, 1
    %v67 = vadd.f32 %v65, %v66
    %v68 = vsub.f32 %v52, %v67
    %v69 = vlaneseq
    %v70 = vand.u32 %v69, 127
    %s71 = smul.u32 0, 8
    %v72 = vstv %s71
    %v73 = vadd.s32 %v70, %v72
    %vm74 = vcmp.lt.s32.totalorder %v73, 8
    %v75 = vsel %vm74, %v68, 0.0
    %v76 = vld [vmem:[#allocation2] sm:$0x1]
    %vm77 = vcmask 64512
    %v78 = vsel %vm77, %v75, 0.0
    %79 = vadd.xlane.f32.xlu0 %v78
    %v80 = vpop.xlane.xlu0 %79
    %v81 = vadd.f32 %v76, %v80
    %vm82 = vcmask 0
    %83 = vst.msk [vmem:[#allocation2] sm:$0x1] %vm82, %v81
    // Predicated region
    $region18: #{tpu_custom_call.1} parent=1 // pred_check
      %p84 = pneg %p24
    $region19: #{tpu_custom_call.1} parent=1 // pred_check_branch
      %86 = sbr.rel (%p84) target = $region21
    $region20: #{tpu_custom_call.1} parent=1 // pred_region
      %v87 = vld [vmem:[#allocation2] sm:$0x1]
      %v88 = vmul.f32 %v87, 0.125
      %v89 = vsub.f32 0.0, %v88
      %v90 = vmul.f32 %v89, 1.442695
      %v91 = vpow.pop %v90
      %v92 = vsub.f32 1.0, %v91
      %v93 = vmax.f32 %v92, 0.0
      %v94 = vmul.f32 %v93, %v93
      %v95 = vmul.f32 %v94, %v88
      %96 = vst.msk [vmem:[#allocation6] sm:$0x1] %vm82, %v95
    $region21: #{tpu_custom_call.1} parent=1 // pred_fallthru
      _
    // Predicated region
    $region22: #{tpu_custom_call.1} parent=1 // pred_check
      _
    $region23: #{tpu_custom_call.1} parent=1 // pred_check_branch
      %98 = sbr.rel (0) target = $region25
    $region24: #{tpu_custom_call.1} parent=1 // pred_region
      %s100 = ssub.s32 16, 16
      %101 = vsyncadd [#allocation5], %s100
      %s103 = sshll.u32 [#allocation6], 4
      %s104 = int_to_ptr.vmem [resolvable:$true] %s103
      %106 = dma.vmem_to_hbm [thread:$0]  %s104, 16, %s2, [#allocation5]
    $region25: #{tpu_custom_call.1} parent=1 // pred_fallthru
      _
    // Predicated region
    $region26: #{tpu_custom_call.1} parent=1 // pred_check
      _
    $region27: #{tpu_custom_call.1} parent=1 // pred_check_branch
      %108 = sbr.rel (0) target = $region29
    $region28: #{tpu_custom_call.1} parent=1 // pred_region
      %109 = dma.done [#allocation5], 16
    $region29: #{tpu_custom_call.1} parent=1 // pred_fallthru
      _
    %110 = vsyncpa [#allocation4], 1
    %111 = vsyncpa [#allocation5], 1

</llo_original>
